<compile_context>
chip_gen: v7x
topology: tpu7x:2x2x1
jax: 0.10.0
libtpu: 0.0.40
codegen_flags: <defaults>
</compile_context>

<pallas_src>
import numpy as np
import jax
import jax.numpy as jnp
from jax import lax
from jax.experimental import pallas as pl
from jax.experimental.pallas import tpu as pltpu

EPSILON = float(np.finfo(np.float32).eps)

# dot_general contraction: contract last dim of lhs with last dim of rhs
# (i.e. a @ b.T without materializing a transpose -> feeds the MXU directly).
_CONTRACT_LAST = (((1,), (1,)), ((), ()))


def _round_up(a, b):
    return (a + b - 1) // b * b


def _cdiv(a, b):
    return -(-a // b)


def _pad2(a, rows, cols):
    pr, pc = rows - a.shape[0], cols - a.shape[1]
    if pr == 0 and pc == 0:
        return a
    return jnp.pad(a, ((0, pr), (0, pc)))


def _vmem_capacity_bytes():
    try:
        return int(pltpu.get_tpu_info().vmem_capacity_bytes)
    except Exception:
        return 64 * 1024 * 1024  # conservative fallback: v7x per-TensorCore VMEM


def _plan_tiles(B, comp_p, features, x_bytes, budget):
    """Pick (tm, tk, feat_pad, nk) whose footprint stays under `budget` bytes.

    Footprint counts TWO pipeline buffers per input (Pallas default), including
    the grid-invariant weights, plus the f32 accumulator scratch.
    """
    def foot(tm, tk):
        return (2 * comp_p * comp_p * 4        # W1 (2 buffers, f32)
                + 2 * comp_p * tk * x_bytes    # W2 chunk (2 buffers)
                + 2 * tm * comp_p * 4          # y tile (f32)
                + 2 * tm * tk * x_bytes        # x tile
                + 2 * tm * comp_p * 4          # out tile (f32)
                + tm * comp_p * 4)             # f32 accumulator scratch

    b_ceil = _round_up(max(B, 1), 16)
    tm_cap = min(512, b_ceil)
    tm_floor = min(128, tm_cap)

    # Prefer the whole (unpadded) feature dim; otherwise K-tile in 128-multiples.
    tk = 128
    for cand in [features] + [t for t in (2048, 1024, 512, 256, 128) if t < features]:
        if foot(tm_floor, cand) <= budget:
            tk = cand
            break

    # Largest batch tile that fits the budget.
    tm = tm_cap
    while tm > 16 and foot(tm, tk) > budget:
        tm -= 16
    tm = max(16, tm)

    # Rebalance against B so batch zero-padding is < one tile total.
    tm = min(tm, _round_up(_cdiv(B, _cdiv(B, tm)), 16))

    if tk == features:
        return tm, features, features, 1       # nk == 1, feature dim unpadded
    feat_pad = _round_up(features, tk)
    return tm, tk, feat_pad, feat_pad // tk


def _unsuper_kernel(scal_ref, y_ref, x_ref, w1_ref, w2_ref, o_ref, acc_ref):
    k = pl.program_id(1)

    @pl.when(k == 0)
    def _():
        acc_ref[...] = jnp.zeros_like(acc_ref)

    # fc2 partial: x_chunk @ W2_chunk.T, f32 accumulation on the MXU.
    acc_ref[...] += lax.dot_general(
        x_ref[...], w2_ref[...], _CONTRACT_LAST,
        preferred_element_type=jnp.float32)

    @pl.when(k == pl.num_programs(1) - 1)
    def _():
        y = y_ref[...]                                          # (tm, comp_p) f32
        # fc1(y) = y @ W1.T (contract last dims, no transpose copy).
        fc1 = lax.dot_general(y, w1_ref[...], _CONTRACT_LAST,
                              preferred_element_type=jnp.float32)
        denom = fc1 + scal_ref[1] * y + scal_ref[0]             # l_2*y + (l_1+EPS)
        r = pl.reciprocal(denom, approx=True)                   # EUP slot
        r = r * (2.0 - denom * r)                               # 1 Newton step -> ~f32
        o_ref[...] = (acc_ref[...] * r * y).astype(o_ref.dtype)


def unsuper_layer(y, x, w1, w2, l_1, l_2, *, precision="bf16",
                  block_b=None, block_k=None):
    """Pallas TPU implementation of UnsuperLayer.forward(y, x).

    y: (B, comp), x: (B, features); w1: (comp, comp), w2: (comp, features)
    (PyTorch nn.Linear weight convention).
    precision: "bf16" (default; fc2 operands x/W2 cast to bf16, f32 accumulate,
               f32 denominator/epilogue) or "fp32" (everything f32, ~1e-5 vs ref).
    """
    B, comp = y.shape
    Bx, features = x.shape
    assert Bx == B
    assert w1.shape == (comp, comp)
    assert w2.shape == (comp, features)
    assert precision in ("bf16", "fp32")

    x_dtype = jnp.bfloat16 if precision == "bf16" else jnp.float32
    x_bytes = 2 if precision == "bf16" else 4

    comp_p = _round_up(comp, 128)                      # lane-dense output / MXU N dim

    capacity = _vmem_capacity_bytes()
    budget = max(24 << 20, capacity * 3 // 4)          # ~48 MiB on v7x, ~96 MiB on v5e/v6e
    vmem_limit = int(min(capacity * 9 // 10, budget + (16 << 20)))

    tm, tk, feat_pad, nk = _plan_tiles(B, comp_p, features, x_bytes, budget)
    if block_b is not None:
        tm = max(16, min(_round_up(block_b, 16), _round_up(B, 16)))
    if block_k is not None and block_k < features:
        tk = _round_up(block_k, 128)
        feat_pad = _round_up(features, tk)
        nk = feat_pad // tk

    nbt = _cdiv(B, tm)
    b_pad = nbt * tm

    # Zero padding is inert: padded rows/cols give 0 * (1/(l_1+EPS)) = 0 and are
    # sliced off below. When nk == 1 the feature dim is not padded at all.
    y_p = _pad2(y.astype(jnp.float32), b_pad, comp_p)
    x_p = _pad2(x.astype(x_dtype), b_pad, feat_pad)
    w1_p = _pad2(w1.astype(jnp.float32), comp_p, comp_p)
    w2_p = _pad2(w2.astype(x_dtype), comp_p, feat_pad)
    scalars = jnp.array([float(l_1) + EPSILON, float(l_2)], jnp.float32)

    out_p = pl.pallas_call(
        _unsuper_kernel,
        out_shape=jax.ShapeDtypeStruct((b_pad, comp_p), jnp.float32),
        grid_spec=pltpu.PrefetchScalarGridSpec(
            num_scalar_prefetch=0,
            grid=(nbt, nk),                                       # K (reduction) last
            in_specs=[
                pl.BlockSpec(memory_space=pltpu.MemorySpace.SMEM),   # [l_1+EPS, l_2]
                pl.BlockSpec((tm, comp_p), lambda i, k: (i, 0)),     # y  (per batch tile)
                pl.BlockSpec((tm, tk), lambda i, k: (i, k)),         # x  (streamed over K)
                pl.BlockSpec((comp_p, comp_p), lambda i, k: (0, 0)), # W1 (resident)
                pl.BlockSpec((comp_p, tk), lambda i, k: (0, k)),     # W2 (streamed over K)
            ],
            out_specs=pl.BlockSpec((tm, comp_p), lambda i, k: (i, 0)),
            scratch_shapes=[pltpu.VMEM((tm, comp_p), jnp.float32)],  # fc2 accumulator
        ),
        compiler_params=pltpu.CompilerParams(
            dimension_semantics=("parallel", "arbitrary"),
            vmem_limit_bytes=vmem_limit),
    )(scalars, y_p, x_p, w1_p, w2_p)

    return out_p[:B, :comp].astype(y.dtype)


def unsuper_layer_ref(y, x, w1, w2, l_1, l_2):
    denominator = y @ w1.T + l_2 * y + l_1 + EPSILON
    numerator = x @ w2.T
    return (numerator / denominator) * y


if __name__ == "__main__":
    l_1, l_2 = 0.1, 0.2

    # --- Case 1: toy UnsuperLayer shape (B=8, comp=32, features=64), nk == 1 ---
    B, comp, features = 8, 32, 64
    k_y, k_x, k_w1, k_w2 = jax.random.split(jax.random.PRNGKey(0), 4)
    y = jax.random.uniform(k_y, (B, comp), jnp.float32, minval=0.1, maxval=1.0)
    x = jax.random.uniform(k_x, (B, features), jnp.float32, minval=0.1, maxval=1.0)
    w1 = jax.random.uniform(k_w1, (comp, comp), jnp.float32,
                            minval=0.0, maxval=1.0 / np.sqrt(comp))
    w2 = jax.random.uniform(k_w2, (comp, features), jnp.float32,
                            minval=0.0, maxval=1.0 / np.sqrt(features))
    ref = unsuper_layer_ref(y, x, w1, w2, l_1, l_2)

    out_fp32 = jax.block_until_ready(
        unsuper_layer(y, x, w1, w2, l_1, l_2, precision="fp32"))
    np.testing.assert_allclose(np.asarray(out_fp32), np.asarray(ref),
                               rtol=1e-5, atol=1e-5)

    out_bf16 = jax.block_until_ready(unsuper_layer(y, x, w1, w2, l_1, l_2))
    np.testing.assert_allclose(np.asarray(out_bf16), np.asarray(ref),
                               rtol=2e-2, atol=2e-2)

    # --- Case 2: unaligned dims + multiple batch tiles (padding, VMEM-resident
    #             weights across grid steps, unpadded feature dim) ------------
    B2, comp2, feat2 = 48, 40, 72
    k_y2, k_x2, k_w12, k_w22 = jax.random.split(jax.random.PRNGKey(1), 4)
    y2 = jax.random.uniform(k_y2, (B2, comp2), jnp.float32, minval=0.1, maxval=1.0)
    x2 = jax.random.uniform(k_x2, (B2, feat2), jnp.float32, minval=0.1, maxval=1.0)
    w12 = jax.random.uniform(k_w12, (comp2, comp2), jnp.float32,
                             minval=0.0, maxval=1.0 / np.sqrt(comp2))
    w22 = jax.random.uniform(k_w22, (comp2, feat2), jnp.float32,
                             minval=0.0, maxval=1.0 / np.sqrt(feat2))
    out2 = jax.block_until_ready(
        unsuper_layer(y2, x2, w12, w22, l_1, l_2, precision="fp32", block_b=16))
    ref2 = unsuper_layer_ref(y2, x2, w12, w22, l_1, l_2)
    np.testing.assert_allclose(np.asarray(out2), np.asarray(ref2),
                               rtol=1e-5, atol=1e-5)

    # --- Case 3: K-tiled accumulator path (nk > 1) + batch tiling -------------
    B3, comp3, feat3 = 40, 32, 256
    k_y3, k_x3, k_w13, k_w23 = jax.random.split(jax.random.PRNGKey(2), 4)
    y3 = jax.random.uniform(k_y3, (B3, comp3), jnp.float32, minval=0.1, maxval=1.0)
    x3 = jax.random.uniform(k_x3, (B3, feat3), jnp.float32, minval=0.1, maxval=1.0)
    w13 = jax.random.uniform(k_w13, (comp3, comp3), jnp.float32,
                             minval=0.0, maxval=1.0 / np.sqrt(comp3))
    w23 = jax.random.uniform(k_w23, (comp3, feat3), jnp.float32,
                             minval=0.0, maxval=1.0 / np.sqrt(feat3))
    out3 = jax.block_until_ready(
        unsuper_layer(y3, x3, w13, w23, l_1, l_2, precision="fp32",
                      block_b=16, block_k=128))
    ref3 = unsuper_layer_ref(y3, x3, w13, w23, l_1, l_2)
    np.testing.assert_allclose(np.asarray(out3), np.asarray(ref3),
                               rtol=1e-5, atol=1e-5)

    print("KERNEL_OK")
</pallas_src>

<mosaic_0001>
module attributes {stable_mosaic.version = 11 : i64} {
  func.func @_unsuper_kernel(%arg0: i32, %arg1: i32, %arg2: memref<2xf32, #tpu.memory_space<smem>>, %arg3: memref<16x128xf32, #tpu.memory_space<vmem>>, %arg4: memref<16x64xf32, #tpu.memory_space<vmem>>, %arg5: memref<128x128xf32, #tpu.memory_space<vmem>>, %arg6: memref<128x64xf32, #tpu.memory_space<vmem>>, %arg7: memref<16x128xf32, #tpu.memory_space<vmem>>, %arg8: memref<16x128xf32, #tpu.memory_space<vmem>>) attributes {dimension_semantics = [#tpu.dimension_semantics<parallel>, #tpu.dimension_semantics<arbitrary>], iteration_bounds = array<i64: 1, 1>, scalar_prefetch = 0 : i64, scratch_operands = 1 : i64, tpu.core_type = #tpu.core_type<tc>, window_params = [{transform_indices = @transform_0, window_bounds = array<i64: 2>}, {transform_indices = @transform_1, window_bounds = array<i64: 16, 128>}, {transform_indices = @transform_2, window_bounds = array<i64: 16, 64>}, {pipeline_mode = #tpu.pipeline_mode<synchronous>, transform_indices = @transform_3, window_bounds = array<i64: 128, 128>}, {transform_indices = @transform_4, window_bounds = array<i64: 128, 64>}, {transform_indices = @transform_5, window_bounds = array<i64: 16, 128>}]} {
    %c0_i32 = arith.constant 0 : i32
    %0 = arith.cmpi eq, %arg1, %c0_i32 : i32
    %1 = arith.extui %0 : i1 to i32
    %c0_i32_0 = arith.constant 0 : i32
    %2 = arith.cmpi ne, %1, %c0_i32_0 : i32
    scf.if %2 {
      %cst_10 = arith.constant 0.000000e+00 : f32
      %12 = vector.broadcast %cst_10 : f32 to vector<16x128xf32>
      %c0_11 = arith.constant 0 : index
      %c0_12 = arith.constant 0 : index
      %13 = vector.load %arg8[%c0_11, %c0_12] : memref<16x128xf32, #tpu.memory_space<vmem>>, vector<16x128xf32>
      tpu.vector_store %arg8[%c0_11, %c0_12], %12 {strides = array<i32>} : memref<16x128xf32, #tpu.memory_space<vmem>>, vector<16x128xf32>,
    } else {
    }
    %c0 = arith.constant 0 : index
    %c0_1 = arith.constant 0 : index
    %3 = vector.load %arg8[%c0, %c0_1] : memref<16x128xf32, #tpu.memory_space<vmem>>, vector<16x128xf32>
    %c0_2 = arith.constant 0 : index
    %c0_3 = arith.constant 0 : index
    %4 = vector.load %arg4[%c0_2, %c0_3] : memref<16x64xf32, #tpu.memory_space<vmem>>, vector<16x64xf32>
    %c0_4 = arith.constant 0 : index
    %c0_5 = arith.constant 0 : index
    %5 = vector.load %arg6[%c0_4, %c0_5] : memref<128x64xf32, #tpu.memory_space<vmem>>, vector<128x64xf32>
    %cst = arith.constant dense<0.000000e+00> : vector<16x128xf32>
    %6 = tpu.matmul %4, %5, %cst {dimension_numbers = #tpu.dot_dimension_numbers<[1], [1], [0], [0], [0, 0, 1, 0], [], []>} : vector<16x64xf32>, vector<128x64xf32>, vector<16x128xf32> -> vector<16x128xf32>
    %7 = arith.addf %3, %6 : vector<16x128xf32>
    %c0_6 = arith.constant 0 : index
    %c0_7 = arith.constant 0 : index
    %8 = vector.load %arg8[%c0_6, %c0_7] : memref<16x128xf32, #tpu.memory_space<vmem>>, vector<16x128xf32>
    tpu.vector_store %arg8[%c0_6, %c0_7], %7 {strides = array<i32>} : memref<16x128xf32, #tpu.memory_space<vmem>>, vector<16x128xf32>,
    %c0_i32_8 = arith.constant 0 : i32
    %9 = arith.cmpi eq, %arg1, %c0_i32_8 : i32
    %10 = arith.extui %9 : i1 to i32
    %c0_i32_9 = arith.constant 0 : i32
    %11 = arith.cmpi ne, %10, %c0_i32_9 : i32
    scf.if %11 {
      %c0_10 = arith.constant 0 : index
      %c0_11 = arith.constant 0 : index
      %12 = vector.load %arg3[%c0_10, %c0_11] : memref<16x128xf32, #tpu.memory_space<vmem>>, vector<16x128xf32>
      %c0_12 = arith.constant 0 : index
      %c0_13 = arith.constant 0 : index
      %13 = vector.load %arg5[%c0_12, %c0_13] : memref<128x128xf32, #tpu.memory_space<vmem>>, vector<128x128xf32>
      %cst_14 = arith.constant dense<0.000000e+00> : vector<16x128xf32>
      %14 = tpu.matmul %12, %13, %cst_14 {dimension_numbers = #tpu.dot_dimension_numbers<[1], [1], [0], [0], [0, 0, 1, 0], [], []>} : vector<16x128xf32>, vector<128x128xf32>, vector<16x128xf32> -> vector<16x128xf32>
      %c1 = arith.constant 1 : index
      %15 = memref.load %arg2[%c1] : memref<2xf32, #tpu.memory_space<smem>>
      %16 = vector.broadcast %15 : f32 to vector<16x128xf32>
      %17 = arith.mulf %16, %12 : vector<16x128xf32>
      %18 = arith.addf %14, %17 : vector<16x128xf32>
      %c0_15 = arith.constant 0 : index
      %19 = memref.load %arg2[%c0_15] : memref<2xf32, #tpu.memory_space<smem>>
      %20 = vector.broadcast %19 : f32 to vector<16x128xf32>
      %21 = arith.addf %18, %20 : vector<16x128xf32>
      %22 = tpu.reciprocal %21 {approx = true} : vector<16x128xf32> -> vector<16x128xf32>
      %23 = arith.mulf %21, %22 : vector<16x128xf32>
      %cst_16 = arith.constant 2.000000e+00 : f32
      %24 = vector.broadcast %cst_16 : f32 to vector<16x128xf32>
      %25 = arith.subf %24, %23 : vector<16x128xf32>
      %26 = arith.mulf %22, %25 : vector<16x128xf32>
      %c0_17 = arith.constant 0 : index
      %c0_18 = arith.constant 0 : index
      %27 = vector.load %arg8[%c0_17, %c0_18] : memref<16x128xf32, #tpu.memory_space<vmem>>, vector<16x128xf32>
      %28 = arith.mulf %27, %26 : vector<16x128xf32>
      %29 = arith.mulf %28, %12 : vector<16x128xf32>
      %c0_19 = arith.constant 0 : index
      %c0_20 = arith.constant 0 : index
      %30 = vector.load %arg7[%c0_19, %c0_20] : memref<16x128xf32, #tpu.memory_space<vmem>>, vector<16x128xf32>
      tpu.vector_store %arg7[%c0_19, %c0_20], %29 {strides = array<i32>} : memref<16x128xf32, #tpu.memory_space<vmem>>, vector<16x128xf32>,
    } else {
    }
    return
  }
  func.func @transform_0(%arg0: i32, %arg1: i32) -> i32 {
    %c0_i32 = arith.constant 0 : i32
    %c0_i32_0 = arith.constant 0 : i32
    return %c0_i32 : i32
  }
  func.func @transform_1(%arg0: i32, %arg1: i32) -> (i32, i32) {
    %c0_i32 = arith.constant 0 : i32
    %c0_i32_0 = arith.constant 0 : i32
    return %arg0, %c0_i32 : i32, i32
  }
  func.func @transform_2(%arg0: i32, %arg1: i32) -> (i32, i32) {
    %c0_i32 = arith.constant 0 : i32
    return %arg0, %arg1 : i32, i32
  }
  func.func @transform_3(%arg0: i32, %arg1: i32) -> (i32, i32) {
    %c0_i32 = arith.constant 0 : i32
    %c0_i32_0 = arith.constant 0 : i32
    %c0_i32_1 = arith.constant 0 : i32
    return %c0_i32, %c0_i32_0 : i32, i32
  }
  func.func @transform_4(%arg0: i32, %arg1: i32) -> (i32, i32) {
    %c0_i32 = arith.constant 0 : i32
    %c0_i32_0 = arith.constant 0 : i32
    return %c0_i32, %arg1 : i32, i32
  }
  func.func @transform_5(%arg0: i32, %arg1: i32) -> (i32, i32) {
    %c0_i32 = arith.constant 0 : i32
    %c0_i32_0 = arith.constant 0 : i32
    return %arg0, %c0_i32 : i32, i32
  }
}

</mosaic_0001>

<llo_original>
// kernel: tpu_custom_call.1
$region0: #{tpu_custom_call.1}
  #allocation0 [shape = 'u32[]', space=smem, size = 0x4, offset = 0x4, fixed_abs, tag = 'smem constant byte address 0x4 - core index']
  #allocation1 [shape = 'u32[144,128]{1,0:T(1,128)}', space=vmem, size = 0x12000, scoped, tag = 'internal scratch']
  #allocation2 [shape = 'f32[16,128]{1,0:T(8,128)}', space=vmem, size = 0x2000, scoped, tag = 'scratch operand']
  %s0 = inlined_call_operand.vmem [shape: f32[2], index: 0, kind: input, shape index: {}]
  %s1 = inlined_call_operand.vmem [shape: f32[16,128], index: 1, kind: input, shape index: {}]
  %s2 = inlined_call_operand.vmem [shape: f32[16,64], index: 2, kind: input, shape index: {}]
  %s3 = inlined_call_operand.vmem [shape: f32[128,128], index: 3, kind: input, shape index: {}]
  %s4 = inlined_call_operand.vmem [shape: f32[128,64], index: 4, kind: input, shape index: {}]
  %s5 = inlined_call_operand.hbm [shape: f32[16,128], index: 5, kind: output, shape index: {}]
  %s6 = sld [smem:[#allocation0]]
  $region42: #{tpu_custom_call.1} parent=0
    _
  %s8 = ssub.s32 1, %s6
  %s9 = scalar_select 0, %s8, %s6
  $region1: #{tpu_custom_call.1} parent=0
    #allocation3 [shape = 'u8[512]{0}', space=smem, size = 0x200, scoped, tag = 'input window, operand 0, single buffered']
    #allocation4 [shape = 's32[1]{0}', space=sflag, size = 0x4, scoped, tag = 'scoped memory for tpu_custom_call.1']
    #allocation5 [shape = 's32[1]{0}', space=sflag, size = 0x4, scoped, tag = 'scoped memory for tpu_custom_call.1']
    #allocation6 [shape = 'u8[8192]{0}', space=vmem, size = 0x2000, scoped, tag = 'output window, operand 0, single buffered']
    %10 = vsyncpa [#allocation5], 0
    %11 = vsyncpa [#allocation4], 0
    // Predicated region
    $region2: #{tpu_custom_call.1} parent=1 // pred_check
      _
    $region3: #{tpu_custom_call.1} parent=1 // pred_check_branch
      %13 = sbr.rel (0) target = $region5
    $region4: #{tpu_custom_call.1} parent=1 // pred_region
      %s15 = ssub.s32 16, 16
      %16 = vsyncadd [#allocation5], %s15
      %s18 = sshll.u32 %s0, 4
      %s19 = int_to_ptr.vmem [resolvable:$true] %s18
      %21 = dma.vmem_to_smem %s19, 16, [#allocation3], [#allocation5]
    $region5: #{tpu_custom_call.1} parent=1 // pred_fallthru
      _
    // Predicated region
    $region6: #{tpu_custom_call.1} parent=1 // pred_check
      _
    $region7: #{tpu_custom_call.1} parent=1 // pred_check_branch
      %23 = sbr.rel (0) target = $region9
    $region8: #{tpu_custom_call.1} parent=1 // pred_region
      _
    $region9: #{tpu_custom_call.1} parent=1 // pred_fallthru
      _
    // Predicated region
    $region10: #{tpu_custom_call.1} parent=1 // pred_check
      _
    $region11: #{tpu_custom_call.1} parent=1 // pred_check_branch
      %25 = sbr.rel (0) target = $region13
    $region12: #{tpu_custom_call.1} parent=1 // pred_region
      _
    $region13: #{tpu_custom_call.1} parent=1 // pred_fallthru
      _
    // Predicated region
    $region14: #{tpu_custom_call.1} parent=1 // pred_check
      _
    $region15: #{tpu_custom_call.1} parent=1 // pred_check_branch
      %27 = sbr.rel (0) target = $region17
    $region16: #{tpu_custom_call.1} parent=1 // pred_region
      _
    $region17: #{tpu_custom_call.1} parent=1 // pred_fallthru
      _
    // Predicated region
    $region18: #{tpu_custom_call.1} parent=1 // pred_check
      _
    $region19: #{tpu_custom_call.1} parent=1 // pred_check_branch
      %29 = sbr.rel (0) target = $region21
    $region20: #{tpu_custom_call.1} parent=1 // pred_region
      _
    $region21: #{tpu_custom_call.1} parent=1 // pred_fallthru
      _
    // Predicated region
    $region22: #{tpu_custom_call.1} parent=1 // pred_check
      _
    $region23: #{tpu_custom_call.1} parent=1 // pred_check_branch
      %31 = sbr.rel (0) target = $region25
    $region24: #{tpu_custom_call.1} parent=1 // pred_region
      %32 = dma.done [#allocation5], 16
    $region25: #{tpu_custom_call.1} parent=1 // pred_fallthru
      _
    %33 = sfence
    %p34 = scmp.eq.s32.totalorder 0, 0
    // Predicated region
    $region26: #{tpu_custom_call.1} parent=1 // pred_check
      %p35 = pneg %p34
    $region27: #{tpu_custom_call.1} parent=1 // pred_check_branch
      %37 = sbr.rel (%p35) target = $region29
    $region28: #{tpu_custom_call.1} parent=1 // pred_region
      %38 = vst [vmem:[#allocation2] sm:$0xff] 0.0
      %39 = vst [vmem:[#allocation2 + $0x8] sm:$0xff] 0.0
    $region29: #{tpu_custom_call.1} parent=1 // pred_fallthru
      _
    %v40 = vld [vmem:[#allocation2] sm:$0xff]
    %v41 = vld [vmem:[#allocation2 + $0x8] sm:$0xff]
    %v42 = vld [vmem:[%s2] sm:$0xff]
    %v43 = vld [vmem:[%s2 + $0x8] sm:$0xff]
    %v44 = vld [vmem:[%s4] sm:$0xff]
    %v45 = vld [vmem:[%s4 + $0x8] sm:$0xff]
    %v46 = vld [vmem:[%s4 + $0x10] sm:$0xff]
    %v47 = vld [vmem:[%s4 + $0x18] sm:$0xff]
    %v48 = vld [vmem:[%s4 + $0x20] sm:$0xff]
    %v49 = vld [vmem:[%s4 + $0x28] sm:$0xff]
    %v50 = vld [vmem:[%s4 + $0x30] sm:$0xff]
    %v51 = vld [vmem:[%s4 + $0x38] sm:$0xff]
    %v52 = vld [vmem:[%s4 + $0x40] sm:$0xff]
    %v53 = vld [vmem:[%s4 + $0x48] sm:$0xff]
    %v54 = vld [vmem:[%s4 + $0x50] sm:$0xff]
    %v55 = vld [vmem:[%s4 + $0x58] sm:$0xff]
    %v56 = vld [vmem:[%s4 + $0x60] sm:$0xff]
    %v57 = vld [vmem:[%s4 + $0x68] sm:$0xff]
    %v58 = vld [vmem:[%s4 + $0x70] sm:$0xff]
    %v59 = vld [vmem:[%s4 + $0x78] sm:$0xff]
    %vm60 = vcmask 523264
    %v62 = vsel %vm60, %v42, 0
    %v65 = vsel %vm60, %v43, 0
    %v68 = vsel %vm60, %v44, 0
    %v71 = vsel %vm60, %v45, 0
    %v74 = vsel %vm60, %v46, 0
    %v77 = vsel %vm60, %v47, 0
    %v80 = vsel %vm60, %v48, 0
    %v83 = vsel %vm60, %v49, 0
    %v86 = vsel %vm60, %v50, 0
    %v89 = vsel %vm60, %v51, 0
    %v92 = vsel %vm60, %v52, 0
    %v95 = vsel %vm60, %v53, 0
    %v98 = vsel %vm60, %v54, 0
    %v101 = vsel %vm60, %v55, 0
    %v104 = vsel %vm60, %v56, 0
    %v107 = vsel %vm60, %v57, 0
    %v110 = vsel %vm60, %v58, 0
    %v113 = vsel %vm60, %v59, 0
    %115 = vmatprep.subr.mxu0 0.0
    %116 = vmatpush1.xpose.msra.mxu0 %v68
    %117 = vmatprep.subr.mxu0 0.0
    %118 = vmatpush1.xpose.msra.mxu0 %v71
    %119 = vmatprep.subr.mxu0 0.0
    %120 = vmatpush1.xpose.msra.mxu0 %v74
    %121 = vmatprep.subr.mxu0 0.0
    %122 = vmatpush1.xpose.msra.mxu0 %v77
    %123 = vmatprep.subr.mxu0 0.0
    %124 = vmatpush1.xpose.msra.mxu0 %v80
    %125 = vmatprep.subr.mxu0 0.0
    %126 = vmatpush1.xpose.msra.mxu0 %v83
    %127 = vmatprep.subr.mxu0 0.0
    %128 = vmatpush1.xpose.msra.mxu0 %v86
    %129 = vmatprep.subr.mxu0 0.0
    %130 = vmatpush1.xpose.msra.mxu0 %v89
    %131 = vmatprep.subr.mxu0 0.0
    %132 = vmatpush1.xpose.msra.mxu0 %v92
    %133 = vmatprep.subr.mxu0 0.0
    %134 = vmatpush1.xpose.msra.mxu0 %v95
    %135 = vmatprep.subr.mxu0 0.0
    %136 = vmatpush1.xpose.msra.mxu0 %v98
    %137 = vmatprep.subr.mxu0 0.0
    %138 = vmatpush1.xpose.msra.mxu0 %v101
    %139 = vmatprep.subr.mxu0 0.0
    %140 = vmatpush1.xpose.msra.mxu0 %v104
    %141 = vmatprep.subr.mxu0 0.0
    %142 = vmatpush1.xpose.msra.mxu0 %v107
    %143 = vmatprep.subr.mxu0 0.0
    %144 = vmatpush1.xpose.msra.mxu0 %v110
    %145 = vmatprep.subr.mxu0 0.0
    %146 = vmatpush1.xpose.msra.mxu0 %v113
    %147 = vmatprep.subr.mxu0 0.0
    %148 = vmatpush1.xpose.msra.mxu0 0.0
    %149 = vmatprep.subr.mxu0 0.0
    %150 = vmatpush1.xpose.msra.mxu0 0.0
    %151 = vmatprep.subr.mxu0 0.0
    %152 = vmatpush1.xpose.msra.mxu0 0.0
    %153 = vmatprep.subr.mxu0 0.0
    %154 = vmatpush1.xpose.msra.mxu0 0.0
    %155 = vmatprep.subr.mxu0 0.0
    %156 = vmatpush1.xpose.msra.mxu0 0.0
    %157 = vmatprep.subr.mxu0 0.0
    %158 = vmatpush1.xpose.msra.mxu0 0.0
    %159 = vmatprep.subr.mxu0 0.0
    %160 = vmatpush1.xpose.msra.mxu0 0.0
    %161 = vmatprep.subr.mxu0 0.0
    %162 = vmatpush1.xpose.msra.mxu0 0.0
    %163 = vmatprep.subr.mxu0 0.0
    %164 = vmatpush1.xpose.msra.mxu0 0.0
    %165 = vmatprep.subr.mxu0 0.0
    %166 = vmatpush1.xpose.msra.mxu0 0.0
    %167 = vmatprep.subr.mxu0 0.0
    %168 = vmatpush1.xpose.msra.mxu0 0.0
    %169 = vmatprep.subr.mxu0 0.0
    %170 = vmatpush1.xpose.msra.mxu0 0.0
    %171 = vmatprep.subr.mxu0 0.0
    %172 = vmatpush1.xpose.msra.mxu0 0.0
    %173 = vmatprep.subr.mxu0 0.0
    %174 = vmatpush1.xpose.msra.mxu0 0.0
    %175 = vmatprep.subr.mxu0 0.0
    %176 = vmatpush1.xpose.msra.mxu0 0.0
    %177 = vmatprep.subr.mxu0 0.0
    %178 = vmatpush1.xpose.msra.mxu0 0.0
    %179 = vmatprep.mubr.f32.mxu0 0.0
    %180 = vmatmul.mubr.f32.gmra.mrb[0].mxu0 %v62
    %v181 = vpop.f32.mrb[0].mxu0
    %v182 = vadd.f32 0.0, %v181
    %v183 = vpop.f32.mrb[0].mxu0
    %184 = vmatprep.mubr.f32.mxu0 0.0
    %185 = vmatmul.mubr.f32.gmra.mrb[0].mxu0 %v65
    %v186 = vpop.f32.mrb[0].mxu0
    %v187 = vadd.f32 0.0, %v186
    %v188 = vpop.f32.mrb[0].mxu0
    %189 = vdwg.mxu0
    %v190 = vadd.f32 %v40, %v182
    %v191 = vadd.f32 %v41, %v187
    %192 = vst [vmem:[#allocation2] sm:$0xff] %v190
    %193 = vst [vmem:[#allocation2 + $0x8] sm:$0xff] %v191
    // Predicated region
    $region30: #{tpu_custom_call.1} parent=1 // pred_check
      %p194 = pneg %p34
    $region31: #{tpu_custom_call.1} parent=1 // pred_check_branch
      %196 = sbr.rel (%p194) target = $region33
    $region32: #{tpu_custom_call.1} parent=1 // pred_region
      %v197 = vld [vmem:[%s1] sm:$0xff]
      %v198 = vld [vmem:[%s1 + $0x8] sm:$0xff]
      %v199 = vld [vmem:[%s3] sm:$0xff]
      %v200 = vld [vmem:[%s3 + $0x8] sm:$0xff]
      %v201 = vld [vmem:[%s3 + $0x10] sm:$0xff]
      %v202 = vld [vmem:[%s3 + $0x18] sm:$0xff]
      %v203 = vld [vmem:[%s3 + $0x20] sm:$0xff]
      %v204 = vld [vmem:[%s3 + $0x28] sm:$0xff]
      %v205 = vld [vmem:[%s3 + $0x30] sm:$0xff]
      %v206 = vld [vmem:[%s3 + $0x38] sm:$0xff]
      %v207 = vld [vmem:[%s3 + $0x40] sm:$0xff]
      %v208 = vld [vmem:[%s3 + $0x48] sm:$0xff]
      %v209 = vld [vmem:[%s3 + $0x50] sm:$0xff]
      %v210 = vld [vmem:[%s3 + $0x58] sm:$0xff]
      %v211 = vld [vmem:[%s3 + $0x60] sm:$0xff]
      %v212 = vld [vmem:[%s3 + $0x68] sm:$0xff]
      %v213 = vld [vmem:[%s3 + $0x70] sm:$0xff]
      %v214 = vld [vmem:[%s3 + $0x78] sm:$0xff]
      %s215 = sld [smem:[#allocation3 + $0x1]]
      %v216 = vstv %s215
      %v217 = vmul.f32 %v216, %v197
      %v218 = vmul.f32 %v216, %v198
      %219 = vmatprep.subr.mxu0 0.0
      %220 = vmatpush1.xpose.msra.mxu0 %v199
      %221 = vmatprep.subr.mxu0 0.0
      %222 = vmatpush1.xpose.msra.mxu0 %v200
      %223 = vmatprep.subr.mxu0 0.0
      %224 = vmatpush1.xpose.msra.mxu0 %v201
      %225 = vmatprep.subr.mxu0 0.0
      %226 = vmatpush1.xpose.msra.mxu0 %v202
      %227 = vmatprep.subr.mxu0 0.0
      %228 = vmatpush1.xpose.msra.mxu0 %v203
      %229 = vmatprep.subr.mxu0 0.0
      %230 = vmatpush1.xpose.msra.mxu0 %v204
      %231 = vmatprep.subr.mxu0 0.0
      %232 = vmatpush1.xpose.msra.mxu0 %v205
      %233 = vmatprep.subr.mxu0 0.0
      %234 = vmatpush1.xpose.msra.mxu0 %v206
      %235 = vmatprep.subr.mxu0 0.0
      %236 = vmatpush1.xpose.msra.mxu0 %v207
      %237 = vmatprep.subr.mxu0 0.0
      %238 = vmatpush1.xpose.msra.mxu0 %v208
      %239 = vmatprep.subr.mxu0 0.0
      %240 = vmatpush1.xpose.msra.mxu0 %v209
      %241 = vmatprep.subr.mxu0 0.0
      %242 = vmatpush1.xpose.msra.mxu0 %v210
      %243 = vmatprep.subr.mxu0 0.0
      %244 = vmatpush1.xpose.msra.mxu0 %v211
      %245 = vmatprep.subr.mxu0 0.0
      %246 = vmatpush1.xpose.msra.mxu0 %v212
      %247 = vmatprep.subr.mxu0 0.0
      %248 = vmatpush1.xpose.msra.mxu0 %v213
      %249 = vmatprep.subr.mxu0 0.0
      %250 = vmatpush1.xpose.msra.mxu0 %v214
      %251 = vmatprep.subr.mxu0 0.0
      %252 = vmatpush1.xpose.msra.mxu0 0.0
      %253 = vmatprep.subr.mxu0 0.0
      %254 = vmatpush1.xpose.msra.mxu0 0.0
      %255 = vmatprep.subr.mxu0 0.0
      %256 = vmatpush1.xpose.msra.mxu0 0.0
      %257 = vmatprep.subr.mxu0 0.0
      %258 = vmatpush1.xpose.msra.mxu0 0.0
      %259 = vmatprep.subr.mxu0 0.0
      %260 = vmatpush1.xpose.msra.mxu0 0.0
      %261 = vmatprep.subr.mxu0 0.0
      %262 = vmatpush1.xpose.msra.mxu0 0.0
      %263 = vmatprep.subr.mxu0 0.0
      %264 = vmatpush1.xpose.msra.mxu0 0.0
      %265 = vmatprep.subr.mxu0 0.0
      %266 = vmatpush1.xpose.msra.mxu0 0.0
      %267 = vmatprep.subr.mxu0 0.0
      %268 = vmatpush1.xpose.msra.mxu0 0.0
      %269 = vmatprep.subr.mxu0 0.0
      %270 = vmatpush1.xpose.msra.mxu0 0.0
      %271 = vmatprep.subr.mxu0 0.0
      %272 = vmatpush1.xpose.msra.mxu0 0.0
      %273 = vmatprep.subr.mxu0 0.0
      %274 = vmatpush1.xpose.msra.mxu0 0.0
      %275 = vmatprep.subr.mxu0 0.0
      %276 = vmatpush1.xpose.msra.mxu0 0.0
      %277 = vmatprep.subr.mxu0 0.0
      %278 = vmatpush1.xpose.msra.mxu0 0.0
      %279 = vmatprep.subr.mxu0 0.0
      %280 = vmatpush1.xpose.msra.mxu0 0.0
      %281 = vmatprep.subr.mxu0 0.0
      %282 = vmatpush1.xpose.msra.mxu0 0.0
      %283 = vmatprep.mubr.f32.mxu0 0.0
      %284 = vmatmul.mubr.f32.gmra.mrb[0].mxu0 %v197
      %v285 = vpop.f32.mrb[0].mxu0
      %v286 = vadd.f32 %v217, %v285
      %v287 = vpop.f32.mrb[0].mxu0
      %288 = vmatprep.mubr.f32.mxu0 0.0
      %289 = vmatmul.mubr.f32.gmra.mrb[0].mxu0 %v198
      %v290 = vpop.f32.mrb[0].mxu0
      %v291 = vadd.f32 %v218, %v290
      %v292 = vpop.f32.mrb[0].mxu0
      %293 = vdwg.mxu0
      %s294 = sld [smem:[#allocation3]]
      %v295 = vstv %s294
      %v296 = vadd.f32 %v286, %v295
      %v297 = vadd.f32 %v291, %v295
      %v298 = vrcp.pop %v296
      %v299 = vrcp.pop %v297
      %v300 = vmul.f32 %v296, %v298
      %v301 = vmul.f32 %v297, %v299
      %v302 = vsub.f32 2.0, %v300
      %v303 = vsub.f32 2.0, %v301
      %v304 = vmul.f32 %v298, %v302
      %v305 = vmul.f32 %v299, %v303
      %v306 = vld [vmem:[#allocation2] sm:$0xff]
      %v307 = vld [vmem:[#allocation2 + $0x8] sm:$0xff]
      %v308 = vmul.f32 %v306, %v304
      %v309 = vmul.f32 %v307, %v305
      %v310 = vmul.f32 %v308, %v197
      %v311 = vmul.f32 %v309, %v198
      %312 = vst [vmem:[#allocation6] sm:$0xff] %v310
      %313 = vst [vmem:[#allocation6 + $0x8] sm:$0xff] %v311
    $region33: #{tpu_custom_call.1} parent=1 // pred_fallthru
      _
    // Predicated region
    $region34: #{tpu_custom_call.1} parent=1 // pred_check
      _
    $region35: #{tpu_custom_call.1} parent=1 // pred_check_branch
      %315 = sbr.rel (0) target = $region37
    $region36: #{tpu_custom_call.1} parent=1 // pred_region
      %s317 = ssub.s32 256, 256
      %318 = vsyncadd [#allocation4], %s317
      %s319 = sshll.u32 [#allocation6], 4
      %s320 = int_to_ptr.vmem [resolvable:$true] %s319
      %325 = dma.vmem_to_hbm [thread:$0]  %s320, 256, %s5, [#allocation4], 128, 128, 8
    $region37: #{tpu_custom_call.1} parent=1 // pred_fallthru
      _
    // Predicated region
    $region38: #{tpu_custom_call.1} parent=1 // pred_check
      _
    $region39: #{tpu_custom_call.1} parent=1 // pred_check_branch
      %327 = sbr.rel (0) target = $region41
    $region40: #{tpu_custom_call.1} parent=1 // pred_region
      %328 = dma.done [#allocation4], 256
    $region41: #{tpu_custom_call.1} parent=1 // pred_fallthru
      _
    %329 = vsyncpa [#allocation4], 1
    %330 = vsyncpa [#allocation5], 1

</llo_original>
